<compile_context>
chip_gen: v6e
topology: v6e:2x2x1
jax: 0.10.0
libtpu: 0.0.40
codegen_flags: <defaults>
</compile_context>

<pallas_src>
import functools
import math

import jax
import jax.numpy as jnp
from jax.experimental import pallas as pl
from jax.experimental.pallas import tpu as pltpu


def _round_up(x, m):
    return (x + m - 1) // m * m


# --------------------------------- kernel ---------------------------------

def self_attention_kernel(x_ref, wqkv_ref, bqkv_ref, o_ref, *,
                          num_tokens, qd_pad, vd_pad):
    # x_ref: (s_pad, din_pad)   one batch (leading batch dim squeezed by spec)
    # wqkv_ref: (din_pad, 2*qd_pad + vd_pad), bqkv_ref: (1, 2*qd_pad + vd_pad)
    s_pad = x_ref.shape[0]

    # Fused (and pre-scaled) Q/K/V projection: one MXU matmul per batch.
    qkv = jnp.dot(x_ref[...], wqkv_ref[...],
                  preferred_element_type=jnp.float32) + bqkv_ref[...]

    # Lane-aligned column splits (qd_pad / vd_pad are multiples of 128).
    q = qkv[:, 0:qd_pad]                       # already scaled by 1/sqrt(Dq)
    k = qkv[:, qd_pad:2 * qd_pad]
    v = qkv[:, 2 * qd_pad:2 * qd_pad + vd_pad]

    # Scores (scale already folded into q).
    s = jnp.dot(q, k.T, preferred_element_type=jnp.float32)

    # Mask padded key positions (static decision at trace time).
    if num_tokens < s_pad:
        key_ids = jax.lax.broadcasted_iota(jnp.int32, (1, s_pad), 1)
        s = jnp.where(key_ids < num_tokens, s, jnp.finfo(s.dtype).min / 2)

    # Numerically-stable softmax; exact divide (kernel is not EUP-bound).
    s = s - jnp.max(s, axis=-1, keepdims=True)
    p = jnp.exp(s)
    p = p / jnp.sum(p, axis=-1, keepdims=True)

    # attn_output = softmax(scores) @ V  -> lane-dense (vd_pad lanes) store.
    o_ref[...] = jnp.dot(p, v, preferred_element_type=jnp.float32).astype(o_ref.dtype)


# ------------------------- parameter fusion (once) -------------------------

def fuse_qkv_params(wq, bq, wk, bk, wv, bv, *, query_dim):
    """Build the padded, fused, pre-scaled QKV weight/bias ONCE at init time."""
    din = wq.shape[0]
    kd = wk.shape[1]
    vd = wv.shape[1]
    assert wq.shape[1] == query_dim and kd == query_dim

    din_pad = _round_up(din, 128)
    qd_pad = _round_up(query_dim, 128)
    vd_pad = _round_up(vd, 128)
    scale = 1.0 / math.sqrt(query_dim)

    wqkv = jnp.zeros((din_pad, 2 * qd_pad + vd_pad), jnp.float32)
    wqkv = wqkv.at[:din, 0:query_dim].set(wq * scale)          # scale folded in
    wqkv = wqkv.at[:din, qd_pad:qd_pad + kd].set(wk)
    wqkv = wqkv.at[:din, 2 * qd_pad:2 * qd_pad + vd].set(wv)

    bqkv = jnp.zeros((1, 2 * qd_pad + vd_pad), jnp.float32)
    bqkv = bqkv.at[:, 0:query_dim].set(bq.reshape(1, -1) * scale)
    bqkv = bqkv.at[:, qd_pad:qd_pad + kd].set(bk.reshape(1, -1))
    bqkv = bqkv.at[:, 2 * qd_pad:2 * qd_pad + vd].set(bv.reshape(1, -1))

    return wqkv, bqkv, qd_pad, vd_pad


# -------------------------------- wrapper ---------------------------------

def self_attention(x, wqkv, bqkv, *, value_dim, qd_pad, vd_pad):
    """x: (N, S, input_dim) f32; wqkv/bqkv: pre-fused padded projection params."""
    n, s, din = x.shape
    din_pad, cols = wqkv.shape
    s_pad = _round_up(s, 8)

    # Single pad op for the activations (zero pad keeps dot products exact).
    x_p = jnp.pad(x, ((0, 0), (0, s_pad - s), (0, din_pad - din)))

    cost = pl.CostEstimate(
        flops=2 * n * s_pad * din_pad * cols
              + 2 * n * s_pad * s_pad * (qd_pad + vd_pad),
        transcendentals=n * s_pad * s_pad,
        bytes_accessed=4 * (x_p.size + wqkv.size + bqkv.size + n * s_pad * vd_pad),
    )

    kernel = functools.partial(self_attention_kernel, num_tokens=s,
                               qd_pad=qd_pad, vd_pad=vd_pad)

    out = pl.pallas_call(
        kernel,
        out_shape=jax.ShapeDtypeStruct((n, s_pad, vd_pad), jnp.float32),
        grid=(n,),
        in_specs=[
            pl.BlockSpec((None, s_pad, din_pad), lambda b: (b, 0, 0)),
            pl.BlockSpec((din_pad, cols), lambda b: (0, 0)),
            pl.BlockSpec((1, cols), lambda b: (0, 0)),
        ],
        out_specs=pl.BlockSpec((None, s_pad, vd_pad), lambda b: (b, 0, 0)),
        compiler_params=pltpu.CompilerParams(dimension_semantics=("parallel",)),
        cost_estimate=cost,
    )(x_p, wqkv, bqkv)

    return out[:, :s, :value_dim]


# ------------------------------- reference --------------------------------

def self_attention_reference(x, wq, bq, wk, bk, wv, bv, *, query_dim):
    q = x @ wq + bq
    k = x @ wk + bk
    v = x @ wv + bv
    scores = jnp.einsum("bqd,bkd->bqk", q, k) / math.sqrt(query_dim)
    p = jax.nn.softmax(scores, axis=-1)
    return jnp.einsum("bqk,bkd->bqd", p, v)


# --------------------------------- main -----------------------------------

if __name__ == "__main__":
    batch, num_tokens = 2, 10
    input_dim, query_dim, value_dim = 48, 32, 24

    key = jax.random.PRNGKey(0)
    kx, kq, kk, kv = jax.random.split(key, 4)
    x = jax.random.normal(kx, (batch, num_tokens, input_dim), jnp.float32)

    def linear_init(k, fan_in, fan_out):
        # nn.Linear default init: U(-1/sqrt(fan_in), 1/sqrt(fan_in)) for W and b.
        kw, kb = jax.random.split(k)
        bound = 1.0 / math.sqrt(fan_in)
        w = jax.random.uniform(kw, (fan_in, fan_out), jnp.float32, -bound, bound)
        b = jax.random.uniform(kb, (fan_out,), jnp.float32, -bound, bound)
        return w, b

    wq, bq = linear_init(kq, input_dim, query_dim)
    wk, bk = linear_init(kk, input_dim, query_dim)
    wv, bv = linear_init(kv, input_dim, value_dim)

    # Parameter fusion happens once (hoisted out of the per-call path).
    wqkv, bqkv, qd_pad, vd_pad = fuse_qkv_params(
        wq, bq, wk, bk, wv, bv, query_dim=query_dim)
    wqkv, bqkv = jax.block_until_ready((wqkv, bqkv))

    attn = jax.jit(functools.partial(self_attention, value_dim=value_dim,
                                     qd_pad=qd_pad, vd_pad=vd_pad))

    out = attn(x, wqkv, bqkv)
    out = jax.block_until_ready(out)

    assert out.shape == (batch, num_tokens, value_dim)
    assert bool(jnp.all(jnp.isfinite(out)))

    ref = self_attention_reference(x, wq, bq, wk, bk, wv, bv, query_dim=query_dim)
    assert bool(jnp.allclose(out, ref, rtol=1e-4, atol=1e-4)), \
        float(jnp.max(jnp.abs(out - ref)))

    print("KERNEL_OK")
</pallas_src>

<mosaic_0001>
module attributes {stable_mosaic.version = 11 : i64} {
  func.func @self_attention_kernel(%arg0: i32, %arg1: memref<1x16x128xf32, #tpu.memory_space<vmem>>, %arg2: memref<128x384xf32, #tpu.memory_space<vmem>>, %arg3: memref<1x384xf32, #tpu.memory_space<vmem>>, %arg4: memref<1x16x128xf32, #tpu.memory_space<vmem>>) attributes {dimension_semantics = [#tpu.dimension_semantics<parallel>], iteration_bounds = array<i64: 2>, scalar_prefetch = 0 : i64, scratch_operands = 0 : i64, tpu.core_type = #tpu.core_type<tc>, window_params = [{transform_indices = @transform_0, window_bounds = array<i64: 1, 16, 128>}, {pipeline_mode = #tpu.pipeline_mode<synchronous>, transform_indices = @transform_1, window_bounds = array<i64: 128, 384>}, {pipeline_mode = #tpu.pipeline_mode<synchronous>, transform_indices = @transform_2, window_bounds = array<i64: 1, 384>}, {transform_indices = @transform_3, window_bounds = array<i64: 1, 16, 128>}]} {
    %c0 = arith.constant 0 : index
    %c0_0 = arith.constant 0 : index
    %c0_1 = arith.constant 0 : index
    %0 = vector.load %arg1[%c0, %c0_0, %c0_1] : memref<1x16x128xf32, #tpu.memory_space<vmem>>, vector<1x16x128xf32>
    %1 = vector.shape_cast %0 : vector<1x16x128xf32> to vector<16x128xf32>
    %c0_2 = arith.constant 0 : index
    %c0_3 = arith.constant 0 : index
    %2 = vector.load %arg2[%c0_2, %c0_3] : memref<128x384xf32, #tpu.memory_space<vmem>>, vector<128x384xf32>
    %cst = arith.constant dense<0.000000e+00> : vector<16x384xf32>
    %3 = tpu.matmul %1, %2, %cst {dimension_numbers = #tpu.dot_dimension_numbers<[1], [0], [0], [1], [0, 0, 1, 1], [], []>} : vector<16x128xf32>, vector<128x384xf32>, vector<16x384xf32> -> vector<16x384xf32>
    %c0_4 = arith.constant 0 : index
    %c0_5 = arith.constant 0 : index
    %4 = vector.load %arg3[%c0_4, %c0_5] : memref<1x384xf32, #tpu.memory_space<vmem>>, vector<1x384xf32>
    %5 = vector.broadcast %4 : vector<1x384xf32> to vector<16x384xf32>
    %6 = arith.addf %3, %5 : vector<16x384xf32>
    %7 = vector.extract_strided_slice %6 {offsets = [0, 0], sizes = [16, 128], strides = [1, 1]} : vector<16x384xf32> to vector<16x128xf32>
    %8 = vector.extract_strided_slice %6 {offsets = [0, 128], sizes = [16, 128], strides = [1, 1]} : vector<16x384xf32> to vector<16x128xf32>
    %9 = vector.extract_strided_slice %6 {offsets = [0, 256], sizes = [16, 128], strides = [1, 1]} : vector<16x384xf32> to vector<16x128xf32>
    %10 = tpu.transpose %8, [1, 0] : vector<16x128xf32> -> vector<128x16xf32>
    %cst_6 = arith.constant dense<0.000000e+00> : vector<16x16xf32>
    %11 = tpu.matmul %7, %10, %cst_6 {dimension_numbers = #tpu.dot_dimension_numbers<[1], [0], [0], [1], [0, 0, 1, 1], [], []>} : vector<16x128xf32>, vector<128x16xf32>, vector<16x16xf32> -> vector<16x16xf32>
    %12 = tpu.iota {dimensions = array<i32: 1>} : vector<1x16xi32>
    %c10_i32 = arith.constant 10 : i32
    %13 = vector.broadcast %c10_i32 : i32 to vector<1x16xi32>
    %14 = arith.cmpi slt, %12, %13 : vector<1x16xi32>
    %cst_7 = arith.constant -1.70141173E+38 : f32
    %15 = vector.shape_cast %14 : vector<1x16xi1> to vector<1x16xi1>
    %16 = vector.broadcast %15 : vector<1x16xi1> to vector<16x16xi1>
    %17 = vector.broadcast %cst_7 : f32 to vector<16x16xf32>
    %18 = arith.select %16, %11, %17 : vector<16x16xi1>, vector<16x16xf32>
    %cst_8 = arith.constant dense<0xFF800000> : vector<16xf32>
    %19 = vector.multi_reduction <maximumf>, %18, %cst_8 [1] : vector<16x16xf32> to vector<16xf32>
    %20 = vector.shape_cast %19 : vector<16xf32> to vector<16x1xf32>
    %21 = vector.broadcast %20 : vector<16x1xf32> to vector<16x16xf32>
    %22 = arith.subf %18, %21 : vector<16x16xf32>
    %23 = math.exp %22 : vector<16x16xf32>
    %cst_9 = arith.constant dense<0.000000e+00> : vector<16xf32>
    %24 = vector.multi_reduction <add>, %23, %cst_9 [1] : vector<16x16xf32> to vector<16xf32>
    %25 = vector.shape_cast %24 : vector<16xf32> to vector<16x1xf32>
    %26 = vector.broadcast %25 : vector<16x1xf32> to vector<16x16xf32>
    %27 = arith.divf %23, %26 : vector<16x16xf32>
    %cst_10 = arith.constant dense<0.000000e+00> : vector<16x128xf32>
    %28 = tpu.matmul %27, %9, %cst_10 {dimension_numbers = #tpu.dot_dimension_numbers<[1], [0], [0], [1], [0, 0, 1, 1], [], []>} : vector<16x16xf32>, vector<16x128xf32>, vector<16x128xf32> -> vector<16x128xf32>
    %c0_11 = arith.constant 0 : index
    %c0_12 = arith.constant 0 : index
    %c0_13 = arith.constant 0 : index
    %29 = vector.load %arg4[%c0_11, %c0_12, %c0_13] : memref<1x16x128xf32, #tpu.memory_space<vmem>>, vector<1x16x128xf32>
    %30 = vector.shape_cast %29 : vector<1x16x128xf32> to vector<16x128xf32>
    %31 = vector.shape_cast %28 : vector<16x128xf32> to vector<1x16x128xf32>
    tpu.vector_store %arg4[%c0_11, %c0_12, %c0_13], %31 {strides = array<i32>} : memref<1x16x128xf32, #tpu.memory_space<vmem>>, vector<1x16x128xf32>,
    return
  }
  func.func @transform_0(%arg0: i32) -> (i32, i32, i32) {
    %c0_i32 = arith.constant 0 : i32
    %c0_i32_0 = arith.constant 0 : i32
    %c0_i32_1 = arith.constant 0 : i32
    return %arg0, %c0_i32, %c0_i32_0 : i32, i32, i32
  }
  func.func @transform_1(%arg0: i32) -> (i32, i32) {
    %c0_i32 = arith.constant 0 : i32
    %c0_i32_0 = arith.constant 0 : i32
    %c0_i32_1 = arith.constant 0 : i32
    return %c0_i32, %c0_i32_0 : i32, i32
  }
  func.func @transform_2(%arg0: i32) -> (i32, i32) {
    %c0_i32 = arith.constant 0 : i32
    %c0_i32_0 = arith.constant 0 : i32
    %c0_i32_1 = arith.constant 0 : i32
    return %c0_i32, %c0_i32_0 : i32, i32
  }
  func.func @transform_3(%arg0: i32) -> (i32, i32, i32) {
    %c0_i32 = arith.constant 0 : i32
    %c0_i32_0 = arith.constant 0 : i32
    %c0_i32_1 = arith.constant 0 : i32
    return %arg0, %c0_i32, %c0_i32_0 : i32, i32, i32
  }
}

</mosaic_0001>

<llo_original>
// kernel: self_attention.1
$region0: #{self_attention.1}
  #allocation0 [shape = 'u32[]', space=smem, size = 0x4, offset = 0x4, fixed_abs, tag = 'smem constant byte address 0x4 - core index']
  #allocation1 [shape = 'u32[144,128]{1,0:T(1,128)}', space=vmem, size = 0x12000, scoped, tag = 'internal scratch']
  %s0 = inlined_call_operand.vmem [shape: f32[2,16,128], index: 0, kind: input, shape index: {}]
  %s1 = inlined_call_operand.hbm [shape: f32[128,384], index: 1, kind: input, shape index: {}]
  %s2 = inlined_call_operand.vmem [shape: f32[1,384], index: 2, kind: input, shape index: {}]
  %s3 = inlined_call_operand.vmem [shape: f32[2,16,128], index: 3, kind: output, shape index: {}]
  %s4 = sld [smem:[#allocation0]]
  $region49: #{self_attention.1} parent=0
    _
  %s6 = ssub.s32 1, %s4
  %s7 = scalar_select 0, %s6, %s4
  $region1: #{self_attention.1} parent=0
    #allocation2 [shape = 'u8[196608]{0}', space=vmem, size = 0x30000, scoped, tag = 'input window, operand 1, single buffered']
    #allocation3 [shape = 's32[2]{0}', space=sflag, size = 0x8, scoped, tag = 'scoped memory for self_attention.1']
    %8 = vsyncpa [#allocation3], 0
    loop: start=0, step=1, limit=4
    $region2: #{self_attention.1} parent=1 // loop_pre_header
      _
    $region3: #{self_attention.1} parent=1 // loop_header
      %s10 = sphi 0, %s14
      %p11 = scmp.ge.s32.totalorder %s10, 4
      %s20 = sphi 0, %s22
      %s23 = sphi 0, %s20
      %s24 = sphi 0, %s23
      %s40 = sphi 0, %s24
      %s44 = sphi 0, %s44
      %s46 = sphi 0, %s44
      %s47 = sphi 0, %s46
      %s61 = sphi 0, %s47
      %s65 = sphi 0, %s65
      %s67 = sphi 0, %s65
      %s68 = sphi 0, %s67
      %s82 = sphi 0, %s68
      %s88 = sphi 0, %s90
      %s91 = sphi 0, %s88
      %s92 = sphi 0, %s91
      %s108 = sphi 0, %s92
    $region4: #{self_attention.1} parent=1 // loop_header_branch
      %13 = sbr.rel (%p11) target = $region8
    $region5: #{self_attention.1} parent=1 // loop_body
      %s15 = ssub.s32 %s10, 1
      %s16 = ssub.s32 %s10, 2
      %s17 = sadd.s32 %s10, 1
      %s18 = ssub.s32 %s10, %s17
      %p19 = scmp.eq.s32.totalorder %s18, 0
      %s21 = sadd.s32 %s20, 1
      %s22 = scalar_select %p19, %s20, %s21
      %p25 = pneg %p19
      %p26 = scmp.eq.s32.totalorder %s10, 1
      %p27 = por %p25, %p26
      %p28 = scmp.ne.s32.totalorder %s20, %s23
      %p29 = scmp.eq.s32.totalorder %s10, 0
      %p30 = por %p28, %p29
      %p31 = scmp.ne.s32.totalorder %s20, %s23
      %p32 = scmp.eq.s32.totalorder %s15, 1
      %p33 = por %p31, %p32
      %p34 = scmp.ne.s32.totalorder %s23, %s24
      %p35 = scmp.eq.s32.totalorder %s15, 0
      %p36 = por %p34, %p35
      %p37 = scmp.ne.s32.totalorder %s23, %s24
      %p38 = scmp.eq.s32.totalorder %s16, 1
      %p39 = por %p37, %p38
      %p41 = scmp.ne.s32.totalorder %s24, %s40
      %p42 = scmp.eq.s32.totalorder %s16, 0
      %p43 = por %p41, %p42
      %s45 = sadd.s32 %s44, 1
      %p48 = scmp.eq.s32.totalorder %s10, 1
      %p49 = scmp.ne.s32.totalorder %s44, %s46
      %p50 = scmp.eq.s32.totalorder %s10, 0
      %p51 = por %p49, %p50
      %p52 = scmp.ne.s32.totalorder %s44, %s46
      %p53 = scmp.eq.s32.totalorder %s15, 1
      %p54 = por %p52, %p53
      %p55 = scmp.ne.s32.totalorder %s46, %s47
      %p56 = scmp.eq.s32.totalorder %s15, 0
      %p57 = por %p55, %p56
      %p58 = scmp.ne.s32.totalorder %s46, %s47
      %p59 = scmp.eq.s32.totalorder %s16, 1
      %p60 = por %p58, %p59
      %p62 = scmp.ne.s32.totalorder %s47, %s61
      %p63 = scmp.eq.s32.totalorder %s16, 0
      %p64 = por %p62, %p63
      %s66 = sadd.s32 %s65, 1
      %p69 = scmp.eq.s32.totalorder %s10, 1
      %p70 = scmp.ne.s32.totalorder %s65, %s67
      %p71 = scmp.eq.s32.totalorder %s10, 0
      %p72 = por %p70, %p71
      %p73 = scmp.ne.s32.totalorder %s65, %s67
      %p74 = scmp.eq.s32.totalorder %s15, 1
      %p75 = por %p73, %p74
      %p76 = scmp.ne.s32.totalorder %s67, %s68
      %p77 = scmp.eq.s32.totalorder %s15, 0
      %p78 = por %p76, %p77
      %p79 = scmp.ne.s32.totalorder %s67, %s68
      %p80 = scmp.eq.s32.totalorder %s16, 1
      %p81 = por %p79, %p80
      %p83 = scmp.ne.s32.totalorder %s68, %s82
      %p84 = scmp.eq.s32.totalorder %s16, 0
      %p85 = por %p83, %p84
      %s86 = ssub.s32 %s10, %s17
      %p87 = scmp.eq.s32.totalorder %s86, 0
      %s89 = sadd.s32 %s88, 1
      %s90 = scalar_select %p87, %s88, %s89
      %p93 = pneg %p87
      %p94 = scmp.eq.s32.totalorder %s10, 1
      %p95 = por %p93, %p94
      %p96 = scmp.ne.s32.totalorder %s88, %s91
      %p97 = scmp.eq.s32.totalorder %s10, 0
      %p98 = por %p96, %p97
      %p99 = scmp.ne.s32.totalorder %s88, %s91
      %p100 = scmp.eq.s32.totalorder %s15, 1
      %p101 = por %p99, %p100
      %p102 = scmp.ne.s32.totalorder %s91, %s92
      %p103 = scmp.eq.s32.totalorder %s15, 0
      %p104 = por %p102, %p103
      %p105 = scmp.ne.s32.totalorder %s91, %s92
      %p106 = scmp.eq.s32.totalorder %s16, 1
      %p107 = por %p105, %p106
      %p109 = scmp.ne.s32.totalorder %s92, %s108
      %p110 = scmp.eq.s32.totalorder %s16, 0
      %p111 = por %p109, %p110
      %p112 = scmp.le.s32.totalorder 1, %s10
      %p113 = scmp.lt.s32.totalorder %s10, 3
      %p114 = pnand %p112, %p113
      %p115 = pneg %p114
      // Predicated region
      $region9: #{self_attention.1} parent=5 // pred_check
        _
      $region10: #{self_attention.1} parent=5 // pred_check_branch
        %117 = sbr.rel (%p114) target = $region12
      $region11: #{self_attention.1} parent=5 // pred_region
        %s118 = ssub.s32 %s10, 1
        // Predicated region
        $region13: #{self_attention.1} parent=11 // pred_check
          %p119 = pneg %p57
        $region14: #{self_attention.1} parent=11 // pred_check_branch
          %121 = sbr.rel (%p119) target = $region16
        $region15: #{self_attention.1} parent=11 // pred_region
          %s123 = ssub.s32 6144, 6144
          %124 = vsyncadd [#allocation3], %s123
          %s125 = sshll.u32 [#allocation2], 4
          %s126 = int_to_ptr.vmem [resolvable:$true] %s125
          %131 = dma.hbm_to_vmem [thread:$0]  %s1, 6144, %s126, [#allocation3], 384, 384, 24
        $region16: #{self_attention.1} parent=11 // pred_fallthru
          _
        // Predicated region
        $region17: #{self_attention.1} parent=11 // pred_check
          %p132 = pneg %p78
        $region18: #{self_attention.1} parent=11 // pred_check_branch
          %134 = sbr.rel (%p132) target = $region20
        $region19: #{self_attention.1} parent=11 // pred_region
          _
        $region20: #{self_attention.1} parent=11 // pred_fallthru
          _
      $region12: #{self_attention.1} parent=5 // pred_fallthru
        _
      %p135 = scmp.lt.s32.totalorder %s10, 2
      // Predicated region
      $region21: #{self_attention.1} parent=5 // pred_check
        %p136 = pneg %p135
      $region22: #{self_attention.1} parent=5 // pred_check_branch
        %138 = sbr.rel (%p136) target = $region24
      $region23: #{self_attention.1} parent=5 // pred_region
        // Predicated region
        $region25: #{self_attention.1} parent=23 // pred_check
          %p139 = pneg %p30
        $region26: #{self_attention.1} parent=23 // pred_check_branch
          %141 = sbr.rel (%p139) target = $region28
        $region27: #{self_attention.1} parent=23 // pred_region
          %p142 = scmp.lt.s32.totalorder %s10, 1
          %s143 = scalar_select %p142, %s10, 1
          %s144 = smul.addr %s143, 2
          %s145 = smul.addr %s144, 8
          %s146 = scalar_lea.vmem %s0, %s145
        $region28: #{self_attention.1} parent=23 // pred_fallthru
          _
      $region24: #{self_attention.1} parent=5 // pred_fallthru
        _
      %p147 = scmp.le.s32.totalorder 1, %s10
      %p148 = scmp.lt.s32.totalorder %s10, 3
      %p149 = pnand %p147, %p148
      %p150 = pneg %p149
      // Predicated region
      $region29: #{self_attention.1} parent=5 // pred_check
        _
      $region30: #{self_attention.1} parent=5 // pred_check_branch
        %152 = sbr.rel (%p149) target = $region32
      $region31: #{self_attention.1} parent=5 // pred_region
        %s153 = ssub.s32 %s10, 1
        // Predicated region
        $region33: #{self_attention.1} parent=31 // pred_check
          %p154 = pneg %p57
        $region34: #{self_attention.1} parent=31 // pred_check_branch
          %156 = sbr.rel (%p154) target = $region36
        $region35: #{self_attention.1} parent=31 // pred_region
          %157 = dma.done [#allocation3], 6144
        $region36: #{self_attention.1} parent=31 // pred_fallthru
          _
        %p158 = scmp.lt.s32.totalorder %s15, 1
        %s159 = scalar_select %p158, %s15, 1
        %s160 = smul.addr %s159, 2
        %s161 = smul.addr %s160, 8
        %s162 = scalar_lea.vmem %s0, %s161
        %p163 = pneg %p36
        %p164 = pneg %p33
        %p165 = pneg %p57
        %p166 = pneg %p54
        %p167 = pneg %p78
        %p168 = pneg %p75
        %p169 = pneg %p104
        %p170 = pneg %p101
        %p171 = scmp.lt.s32.totalorder %s15, 1
        %s172 = scalar_select %p171, %s15, 1
        %s173 = smul.addr %s172, 2
        %s174 = smul.addr %s173, 8
        %s175 = scalar_lea.vmem %s3, %s174
        %p176 = scmp.lt.s32.totalorder %s15, 1
        %s177 = scalar_select %p176, %s15, 1
        %s178 = smul.addr %s177, 2
        %s179 = smul.addr %s178, 8
        %s180 = scalar_lea.vmem %s0, %s179
        %p181 = scmp.lt.s32.totalorder %s15, 1
        %s182 = scalar_select %p181, %s15, 1
        %s183 = smul.addr %s182, 2
        %s184 = smul.addr %s183, 8
        %s185 = scalar_lea.vmem %s3, %s184
        %v186 = vld [vmem:[%s180] sm:$0xff]
        %v187 = vld [vmem:[%s180 + $0x8] sm:$0xff]
        %v188 = vld [vmem:[#allocation2] sm:$0xff]
        %v189 = vld [vmem:[#allocation2 + $0x8] sm:$0xff]
        %v190 = vld [vmem:[#allocation2 + $0x10] sm:$0xff]
        %v191 = vld [vmem:[#allocation2 + $0x18] sm:$0xff]
        %v192 = vld [vmem:[#allocation2 + $0x20] sm:$0xff]
        %v193 = vld [vmem:[#allocation2 + $0x28] sm:$0xff]
        %v194 = vld [vmem:[#allocation2 + $0x30] sm:$0xff]
        %v195 = vld [vmem:[#allocation2 + $0x38] sm:$0xff]
        %v196 = vld [vmem:[#allocation2 + $0x40] sm:$0xff]
        %v197 = vld [vmem:[#allocation2 + $0x48] sm:$0xff]
        %v198 = vld [vmem:[#allocation2 + $0x50] sm:$0xff]
        %v199 = vld [vmem:[#allocation2 + $0x58] sm:$0xff]
        %v200 = vld [vmem:[#allocation2 + $0x60] sm:$0xff]
        %v201 = vld [vmem:[#allocation2 + $0x68] sm:$0xff]
        %v202 = vld [vmem:[#allocation2 + $0x70] sm:$0xff]
        %v203 = vld [vmem:[#allocation2 + $0x78] sm:$0xff]
        %v204 = vld [vmem:[#allocation2 + $0x80] sm:$0xff]
        %v205 = vld [vmem:[#allocation2 + $0x88] sm:$0xff]
        %v206 = vld [vmem:[#allocation2 + $0x90] sm:$0xff]
        %v207 = vld [vmem:[#allocation2 + $0x98] sm:$0xff]
        %v208 = vld [vmem:[#allocation2 + $0xa0] sm:$0xff]
        %v209 = vld [vmem:[#allocation2 + $0xa8] sm:$0xff]
        %v210 = vld [vmem:[#allocation2 + $0xb0] sm:$0xff]
        %v211 = vld [vmem:[#allocation2 + $0xb8] sm:$0xff]
        %v212 = vld [vmem:[#allocation2 + $0xc0] sm:$0xff]
        %v213 = vld [vmem:[#allocation2 + $0xc8] sm:$0xff]
        %v214 = vld [vmem:[#allocation2 + $0xd0] sm:$0xff]
        %v215 = vld [vmem:[#allocation2 + $0xd8] sm:$0xff]
        %v216 = vld [vmem:[#allocation2 + $0xe0] sm:$0xff]
        %v217 = vld [vmem:[#allocation2 + $0xe8] sm:$0xff]
        %v218 = vld [vmem:[#allocation2 + $0xf0] sm:$0xff]
        %v219 = vld [vmem:[#allocation2 + $0xf8] sm:$0xff]
        %v220 = vld [vmem:[#allocation2 + $0x100] sm:$0xff]
        %v221 = vld [vmem:[#allocation2 + $0x108] sm:$0xff]
        %v222 = vld [vmem:[#allocation2 + $0x110] sm:$0xff]
        %v223 = vld [vmem:[#allocation2 + $0x118] sm:$0xff]
        %v224 = vld [vmem:[#allocation2 + $0x120] sm:$0xff]
        %v225 = vld [vmem:[#allocation2 + $0x128] sm:$0xff]
        %v226 = vld [vmem:[#allocation2 + $0x130] sm:$0xff]
        %v227 = vld [vmem:[#allocation2 + $0x138] sm:$0xff]
        %v228 = vld [vmem:[#allocation2 + $0x140] sm:$0xff]
        %v229 = vld [vmem:[#allocation2 + $0x148] sm:$0xff]
        %v230 = vld [vmem:[#allocation2 + $0x150] sm:$0xff]
        %v231 = vld [vmem:[#allocation2 + $0x158] sm:$0xff]
        %v232 = vld [vmem:[#allocation2 + $0x160] sm:$0xff]
        %v233 = vld [vmem:[#allocation2 + $0x168] sm:$0xff]
        %v234 = vld [vmem:[#allocation2 + $0x170] sm:$0xff]
        %v235 = vld [vmem:[#allocation2 + $0x178] sm:$0xff]
        %v236 = vld [vmem:[%s2] sm:$0x7]
        %v238 = vlaneseq
        %v239 = vshrl.u32 %v238, 7
        %v240 = vsub.s32 0, %v239
        %v241 = vrot.slane %v236, %v240
        %v242 = vlaneseq
        %v243 = vshrl.u32 %v242, 7
        %v244 = vsub.s32 1, %v243
        %v245 = vrot.slane %v236, %v244
        %v246 = vlaneseq
        %v247 = vshrl.u32 %v246, 7
        %v248 = vsub.s32 2, %v247
        %v249 = vrot.slane %v236, %v248
        %253 = vmatprep.subr.mxu0 %v234
        %254 = vmatpush1.msra.mxu0 %v233
        %255 = vmatprep.subr.mxu0 %v231
        %256 = vmatpush1.msra.mxu0 %v230
        %257 = vmatprep.subr.mxu0 %v228
        %258 = vmatpush1.msra.mxu0 %v227
        %259 = vmatprep.subr.mxu0 %v225
        %260 = vmatpush1.msra.mxu0 %v224
        %261 = vmatprep.subr.mxu0 %v222
        %262 = vmatpush1.msra.mxu0 %v221
        %263 = vmatprep.subr.mxu0 %v219
        %264 = vmatpush1.msra.mxu0 %v218
        %265 = vmatprep.subr.mxu0 %v216
        %266 = vmatpush1.msra.mxu0 %v215
        %267 = vmatprep.subr.mxu0 %v213
        %268 = vmatpush1.msra.mxu0 %v212
        %269 = vmatprep.subr.mxu0 %v210
        %270 = vmatpush1.msra.mxu0 %v209
        %271 = vmatprep.subr.mxu0 %v207
        %272 = vmatpush1.msra.mxu0 %v206
        %273 = vmatprep.subr.mxu0 %v204
        %274 = vmatpush1.msra.mxu0 %v203
        %275 = vmatprep.subr.mxu0 %v201
        %276 = vmatpush1.msra.mxu0 %v200
        %277 = vmatprep.subr.mxu0 %v198
        %278 = vmatpush1.msra.mxu0 %v197
        %279 = vmatprep.subr.mxu0 %v195
        %280 = vmatpush1.msra.mxu0 %v194
        %281 = vmatprep.subr.mxu0 %v192
        %282 = vmatpush1.msra.mxu0 %v191
        %283 = vmatprep.subr.mxu0 %v189
        %284 = vmatpush1.msra.mxu0 %v188
        %285 = vmatprep.subr.mxu0 0.0
        %286 = vmatpush2.msra.mxu0 0.0
        %287 = vmatprep.subr.mxu0 0.0
        %288 = vmatpush2.msra.mxu0 0.0
        %289 = vmatprep.subr.mxu0 0.0
        %290 = vmatpush2.msra.mxu0 0.0
        %291 = vmatprep.subr.mxu0 0.0
        %292 = vmatpush2.msra.mxu0 0.0
        %293 = vmatprep.subr.mxu0 0.0
        %294 = vmatpush2.msra.mxu0 0.0
        %295 = vmatprep.subr.mxu0 0.0
        %296 = vmatpush2.msra.mxu0 0.0
        %297 = vmatprep.subr.mxu0 0.0
        %298 = vmatpush2.msra.mxu0 0.0
        %299 = vmatprep.subr.mxu0 0.0
        %300 = vmatpush2.msra.mxu0 0.0
        %301 = vmatprep.subr.mxu0 0.0
        %302 = vmatpush2.msra.mxu0 0.0
        %303 = vmatprep.subr.mxu0 0.0
        %304 = vmatpush2.msra.mxu0 0.0
        %305 = vmatprep.subr.mxu0 0.0
        %306 = vmatpush2.msra.mxu0 0.0
        %307 = vmatprep.subr.mxu0 0.0
        %308 = vmatpush2.msra.mxu0 0.0
        %309 = vmatprep.subr.mxu0 0.0
        %310 = vmatpush2.msra.mxu0 0.0
        %311 = vmatprep.subr.mxu0 0.0
        %312 = vmatpush2.msra.mxu0 0.0
        %313 = vmatprep.subr.mxu0 0.0
        %314 = vmatpush2.msra.mxu0 0.0
        %315 = vmatprep.subr.mxu0 0.0
        %316 = vmatpush2.msra.mxu0 0.0
        %317 = vmatprep.mubr.f32.mxu0 0.0
        %318 = vmatmul.mubr.f32.gmra.mxu0 %v186
        %v319 = vpop.f32.mrf.mxu0
        %v320 = vadd.f32 %v241, %v319
        %v321 = vpop.f32.mrf.mxu0
        %v322 = vadd.f32 %v245, %v321
        %323 = vmatprep.mubr.f32.mxu0 0.0
        %324 = vmatmul.mubr.f32.gmra.mxu0 %v187
        %v325 = vpop.f32.mrf.mxu0
        %v326 = vadd.f32 %v241, %v325
        %v327 = vpop.f32.mrf.mxu0
        %v328 = vadd.f32 %v245, %v327
        %329 = vdwg.mxu0
        %330 = vmatprep.subr.mxu0 0.0
        %331 = vmatpush1.msra.mxu0 %v235
        %332 = vmatprep.subr.mxu0 0.0
        %333 = vmatpush1.msra.mxu0 %v232
        %334 = vmatprep.subr.mxu0 0.0
        %335 = vmatpush1.msra.mxu0 %v229
        %336 = vmatprep.subr.mxu0 0.0
        %337 = vmatpush1.msra.mxu0 %v226
        %338 = vmatprep.subr.mxu0 0.0
        %339 = vmatpush1.msra.mxu0 %v223
        %340 = vmatprep.subr.mxu0 0.0
        %341 = vmatpush1.msra.mxu0 %v220
        %342 = vmatprep.subr.mxu0 0.0
        %343 = vmatpush1.msra.mxu0 %v217
        %344 = vmatprep.subr.mxu0 0.0
        %345 = vmatpush1.msra.mxu0 %v214
        %346 = vmatprep.subr.mxu0 0.0
        %347 = vmatpush1.msra.mxu0 %v211
        %348 = vmatprep.subr.mxu0 0.0
        %349 = vmatpush1.msra.mxu0 %v208
        %350 = vmatprep.subr.mxu0 0.0
        %351 = vmatpush1.msra.mxu0 %v205
        %352 = vmatprep.subr.mxu0 0.0
        %353 = vmatpush1.msra.mxu0 %v202
        %354 = vmatprep.subr.mxu0 0.0
        %355 = vmatpush1.msra.mxu0 %v199
        %356 = vmatprep.subr.mxu0 0.0
        %357 = vmatpush1.msra.mxu0 %v196
        %358 = vmatprep.subr.mxu0 0.0
        %359 = vmatpush1.msra.mxu0 %v193
        %360 = vmatprep.subr.mxu0 0.0
        %361 = vmatpush1.msra.mxu0 %v190
        %362 = vmatprep.subr.mxu0 0.0
        %363 = vmatpush2.msra.mxu0 0.0
        %364 = vmatprep.subr.mxu0 0.0
        %365 = vmatpush2.msra.mxu0 0.0
        %366 = vmatprep.subr.mxu0 0.0
        %367 = vmatpush2.msra.mxu0 0.0
        %368 = vmatprep.subr.mxu0 0.0
        %369 = vmatpush2.msra.mxu0 0.0
        %370 = vmatprep.subr.mxu0 0.0
        %371 = vmatpush2.msra.mxu0 0.0
        %372 = vmatprep.subr.mxu0 0.0
        %373 = vmatpush2.msra.mxu0 0.0
        %374 = vmatprep.subr.mxu0 0.0
        %375 = vmatpush2.msra.mxu0 0.0
        %376 = vmatprep.subr.mxu0 0.0
        %377 = vmatpush2.msra.mxu0 0.0
        %378 = vmatprep.subr.mxu0 0.0
        %379 = vmatpush2.msra.mxu0 0.0
        %380 = vmatprep.subr.mxu0 0.0
        %381 = vmatpush2.msra.mxu0 0.0
        %382 = vmatprep.subr.mxu0 0.0
        %383 = vmatpush2.msra.mxu0 0.0
        %384 = vmatprep.subr.mxu0 0.0
        %385 = vmatpush2.msra.mxu0 0.0
        %386 = vmatprep.subr.mxu0 0.0
        %387 = vmatpush2.msra.mxu0 0.0
        %388 = vmatprep.subr.mxu0 0.0
        %389 = vmatpush2.msra.mxu0 0.0
        %390 = vmatprep.subr.mxu0 0.0
        %391 = vmatpush2.msra.mxu0 0.0
        %392 = vmatprep.subr.mxu0 0.0
        %393 = vmatpush2.msra.mxu0 0.0
        %394 = vmatprep.mubr.f32.mxu0 0.0
        %395 = vmatmul.mubr.f32.gmra.mxu0 %v186
        %v396 = vpop.f32.mrf.mxu0
        %v397 = vadd.f32 %v249, %v396
        %v398 = vpop.f32.mrf.mxu0
        %399 = vmatprep.mubr.f32.mxu0 0.0
        %400 = vmatmul.mubr.f32.gmra.mxu0 %v187
        %v401 = vpop.f32.mrf.mxu0
        %v402 = vadd.f32 %v249, %v401
        %v403 = vpop.f32.mrf.mxu0
        %404 = vdwg.mxu0
        %405 = vmatprep.subr.mxu0 0.0
        %406 = vmatpush1.xpose.msra.mxu0 0.0
        %407 = vmatprep.subr.mxu0 0.0
        %408 = vmatpush1.xpose.msra.mxu0 0.0
        %409 = vmatprep.subr.mxu0 0.0
        %410 = vmatpush1.xpose.msra.mxu0 0.0
        %411 = vmatprep.subr.mxu0 0.0
        %412 = vmatpush1.xpose.msra.mxu0 0.0
        %413 = vmatprep.subr.mxu0 0.0
        %414 = vmatpush1.xpose.msra.mxu0 0.0
        %415 = vmatprep.subr.mxu0 0.0
        %416 = vmatpush1.xpose.msra.mxu0 0.0
        %417 = vmatprep.subr.mxu0 0.0
        %418 = vmatpush1.xpose.msra.mxu0 0.0
        %419 = vmatprep.subr.mxu0 0.0
        %420 = vmatpush1.xpose.msra.mxu0 0.0
        %421 = vmatprep.subr.mxu0 0.0
        %422 = vmatpush1.xpose.msra.mxu0 0.0
        %423 = vmatprep.subr.mxu0 0.0
        %424 = vmatpush1.xpose.msra.mxu0 0.0
        %425 = vmatprep.subr.mxu0 0.0
        %426 = vmatpush1.xpose.msra.mxu0 0.0
        %427 = vmatprep.subr.mxu0 0.0
        %428 = vmatpush1.xpose.msra.mxu0 0.0
        %429 = vmatprep.subr.mxu0 0.0
        %430 = vmatpush1.xpose.msra.mxu0 0.0
        %431 = vmatprep.subr.mxu0 0.0
        %432 = vmatpush1.xpose.msra.mxu0 0.0
        %433 = vmatprep.subr.mxu0 0.0
        %434 = vmatpush1.xpose.msra.mxu0 %v328
        %435 = vmatprep.subr.mxu0 0.0
        %436 = vmatpush1.xpose.msra.mxu0 %v322
        %437 = vmatprep.subr.mxu0 0.0
        %438 = vmatpush2.xpose.msra.mxu0 0.0
        %439 = vmatprep.subr.mxu0 0.0
        %440 = vmatpush2.xpose.msra.mxu0 0.0
        %441 = vmatprep.subr.mxu0 0.0
        %442 = vmatpush2.xpose.msra.mxu0 0.0
        %443 = vmatprep.subr.mxu0 0.0
        %444 = vmatpush2.xpose.msra.mxu0 0.0
        %445 = vmatprep.subr.mxu0 0.0
        %446 = vmatpush2.xpose.msra.mxu0 0.0
        %447 = vmatprep.subr.mxu0 0.0
        %448 = vmatpush2.xpose.msra.mxu0 0.0
        %449 = vmatprep.subr.mxu0 0.0
        %450 = vmatpush2.xpose.msra.mxu0 0.0
        %451 = vmatprep.subr.mxu0 0.0
        %452 = vmatpush2.xpose.msra.mxu0 0.0
        %453 = vmatprep.subr.mxu0 0.0
        %454 = vmatpush2.xpose.msra.mxu0 0.0
        %455 = vmatprep.subr.mxu0 0.0
        %456 = vmatpush2.xpose.msra.mxu0 0.0
        %457 = vmatprep.subr.mxu0 0.0
        %458 = vmatpush2.xpose.msra.mxu0 0.0
        %459 = vmatprep.subr.mxu0 0.0
        %460 = vmatpush2.xpose.msra.mxu0 0.0
        %461 = vmatprep.subr.mxu0 0.0
        %462 = vmatpush2.xpose.msra.mxu0 0.0
        %463 = vmatprep.subr.mxu0 0.0
        %464 = vmatpush2.xpose.msra.mxu0 0.0
        %465 = vmatprep.subr.mxu0 0.0
        %466 = vmatpush2.xpose.msra.mxu0 0.0
        %467 = vmatprep.subr.mxu0 0.0
        %468 = vmatpush2.xpose.msra.mxu0 0.0
        %469 = vmatprep.mubr.f32.mxu0 0.0
        %470 = vmatmul.mubr.f32.gmra.mxu0 %v320
        %v471 = vpop.f32.mrf.mxu0
        %v472 = vadd.f32 0.0, %v471
        %v473 = vpop.f32.mrf.mxu0
        %474 = vmatprep.mubr.f32.mxu0 0.0
        %475 = vmatmul.mubr.f32.gmra.mxu0 %v326
        %v476 = vpop.f32.mrf.mxu0
        %v477 = vadd.f32 0.0, %v476
        %v478 = vpop.f32.mrf.mxu0
        %479 = vdwg.mxu0
        %v480 = vlaneseq
        %v481 = vand.u32 %v480, 127
        %vm482 = vcmp.lt.s32.totalorder %v481, 10
        %v483 = vsel %vm482, 1, 0
        %vm484 = vcmp.eq.s32.totalorder %v483, 1
        %v485 = vsel %vm484, %v472, -1.7014117e+38
        %v486 = vsel %vm484, %v477, -1.7014117e+38
        %vm487 = vcmask 130048
        %v488 = vsel %vm487, %v485, -inf
        %489 = vmax.xlane.f32.xlu0 %v488
        %v490 = vpop.xlane.xlu0 %489
        %v491 = vsel %vm487, %v486, -inf
        %492 = vmax.xlane.f32.xlu0 %v491
        %v493 = vpop.xlane.xlu0 %492
        %v494 = vsub.f32 %v485, %v490
        %v495 = vsub.f32 %v486, %v493
        %v496 = vmul.f32 %v494, 1.442695
        %v497 = vpow.pop %v496
        %v498 = vmul.f32 %v495, 1.442695
        %v499 = vpow.pop %v498
        %v500 = vsel %vm487, %v497, 0.0
        %501 = vadd.xlane.f32.xlu0 %v500
        %v502 = vpop.xlane.xlu0 %501
        %v503 = vsel %vm487, %v499, 0.0
        %504 = vadd.xlane.f32.xlu0 %v503
        %v505 = vpop.xlane.xlu0 %504
        %v506 = vrcp.pop %v502
        %v507 = vmul.f32 %v497, %v506
        %v508 = vrcp.pop %v505
        %v509 = vmul.f32 %v499, %v508
        %v511 = vsel %vm487, %v507, 0
        %v514 = vsel %vm487, %v509, 0
        %516 = vmatprep.subr.mxu0 0.0
        %517 = vmatpush1.msra.mxu0 0.0
        %518 = vmatprep.subr.mxu0 0.0
        %519 = vmatpush1.msra.mxu0 0.0
        %520 = vmatprep.subr.mxu0 0.0
        %521 = vmatpush1.msra.mxu0 0.0
        %522 = vmatprep.subr.mxu0 0.0
        %523 = vmatpush1.msra.mxu0 0.0
        %524 = vmatprep.subr.mxu0 0.0
        %525 = vmatpush1.msra.mxu0 0.0
        %526 = vmatprep.subr.mxu0 0.0
        %527 = vmatpush1.msra.mxu0 0.0
        %528 = vmatprep.subr.mxu0 0.0
        %529 = vmatpush1.msra.mxu0 0.0
        %530 = vmatprep.subr.mxu0 0.0
        %531 = vmatpush1.msra.mxu0 0.0
        %532 = vmatprep.subr.mxu0 0.0
        %533 = vmatpush1.msra.mxu0 0.0
        %534 = vmatprep.subr.mxu0 0.0
        %535 = vmatpush1.msra.mxu0 0.0
        %536 = vmatprep.subr.mxu0 0.0
        %537 = vmatpush1.msra.mxu0 0.0
        %538 = vmatprep.subr.mxu0 0.0
        %539 = vmatpush1.msra.mxu0 0.0
        %540 = vmatprep.subr.mxu0 0.0
        %541 = vmatpush1.msra.mxu0 0.0
        %542 = vmatprep.subr.mxu0 0.0
        %543 = vmatpush1.msra.mxu0 0.0
        %544 = vmatprep.subr.mxu0 0.0
        %545 = vmatpush1.msra.mxu0 %v402
        %546 = vmatprep.subr.mxu0 0.0
        %547 = vmatpush1.msra.mxu0 %v397
        %548 = vmatprep.subr.mxu0 0.0
        %549 = vmatpush2.msra.mxu0 0.0
        %550 = vmatprep.subr.mxu0 0.0
        %551 = vmatpush2.msra.mxu0 0.0
        %552 = vmatprep.subr.mxu0 0.0
        %553 = vmatpush2.msra.mxu0 0.0
        %554 = vmatprep.subr.mxu0 0.0
        %555 = vmatpush2.msra.mxu0 0.0
        %556 = vmatprep.subr.mxu0 0.0
        %557 = vmatpush2.msra.mxu0 0.0
        %558 = vmatprep.subr.mxu0 0.0
        %559 = vmatpush2.msra.mxu0 0.0
        %560 = vmatprep.subr.mxu0 0.0
        %561 = vmatpush2.msra.mxu0 0.0
        %562 = vmatprep.subr.mxu0 0.0
        %563 = vmatpush2.msra.mxu0 0.0
        %564 = vmatprep.subr.mxu0 0.0
        %565 = vmatpush2.msra.mxu0 0.0
        %566 = vmatprep.subr.mxu0 0.0
        %567 = vmatpush2.msra.mxu0 0.0
        %568 = vmatprep.subr.mxu0 0.0
        %569 = vmatpush2.msra.mxu0 0.0
        %570 = vmatprep.subr.mxu0 0.0
        %571 = vmatpush2.msra.mxu0 0.0
        %572 = vmatprep.subr.mxu0 0.0
        %573 = vmatpush2.msra.mxu0 0.0
        %574 = vmatprep.subr.mxu0 0.0
        %575 = vmatpush2.msra.mxu0 0.0
        %576 = vmatprep.subr.mxu0 0.0
        %577 = vmatpush2.msra.mxu0 0.0
        %578 = vmatprep.subr.mxu0 0.0
        %579 = vmatpush2.msra.mxu0 0.0
        %580 = vmatprep.mubr.f32.mxu0 0.0
        %581 = vmatmul.mubr.f32.gmra.mxu0 %v511
        %v582 = vpop.f32.mrf.mxu0
        %v583 = vadd.f32 0.0, %v582
        %v584 = vpop.f32.mrf.mxu0
        %585 = vmatprep.mubr.f32.mxu0 0.0
        %586 = vmatmul.mubr.f32.gmra.mxu0 %v514
        %v587 = vpop.f32.mrf.mxu0
        %v588 = vadd.f32 0.0, %v587
        %v589 = vpop.f32.mrf.mxu0
        %590 = vdwg.mxu0
        %591 = vst [vmem:[%s185] sm:$0xff] %v583
        %592 = vst [vmem:[%s185 + $0x8] sm:$0xff] %v588
        %p593 = scmp.lt.s32.totalorder %s15, 1
        %s594 = scalar_select %p593, %s15, 1
        %s595 = smul.addr %s594, 2
        %s596 = smul.addr %s595, 8
        %s597 = scalar_lea.vmem %s3, %s596
        // Predicated region
        $region37: #{self_attention.1} parent=31 // pred_check
          %p598 = pneg %p101
        $region38: #{self_attention.1} parent=31 // pred_check_branch
          %600 = sbr.rel (%p598) target = $region40
        $region39: #{self_attention.1} parent=31 // pred_region
          _
        $region40: #{self_attention.1} parent=31 // pred_fallthru
          _
      $region32: #{self_attention.1} parent=5 // pred_fallthru
        _
      %p601 = scmp.le.s32.totalorder 2, %s10
      // Predicated region
      $region41: #{self_attention.1} parent=5 // pred_check
        %p602 = pneg %p601
      $region42: #{self_attention.1} parent=5 // pred_check_branch
        %604 = sbr.rel (%p602) target = $region44
      $region43: #{self_attention.1} parent=5 // pred_region
        %s605 = ssub.s32 %s10, 2
        // Predicated region
        $region45: #{self_attention.1} parent=43 // pred_check
          %p606 = pneg %p107
        $region46: #{self_attention.1} parent=43 // pred_check_branch
          %608 = sbr.rel (%p606) target = $region48
        $region47: #{self_attention.1} parent=43 // pred_region
          %p609 = scmp.lt.s32.totalorder %s16, 1
          %s610 = scalar_select %p609, %s16, 1
          %s611 = smul.addr %s610, 2
          %s612 = smul.addr %s611, 8
          %s613 = scalar_lea.vmem %s3, %s612
        $region48: #{self_attention.1} parent=43 // pred_fallthru
          _
      $region44: #{self_attention.1} parent=5 // pred_fallthru
        _
    $region6: #{self_attention.1} parent=1 // loop_footer
      %s14 = sadd.s32 1, %s10
    $region7: #{self_attention.1} parent=1 // loop_footer_branch
      %9 = sbr.rel target = $region3
    $region8: #{self_attention.1} parent=1 // loop_exit
      _
    %614 = vsyncpa [#allocation3], 1
    %s615 = scalar_lea.sflag [#allocation3], 1
    %616 = vsyncpa %s615, 1

</llo_original>
